<compile_context>
chip_gen: v6e
topology: v6e:2x2x1
jax: 0.10.0
libtpu: 0.0.40
codegen_flags: <defaults>
</compile_context>

<pallas_src>
import functools
import math

import jax
import jax.numpy as jnp
from jax.experimental import pallas as pl
from jax.experimental.pallas import tpu as pltpu


def _round_up(x, m):
    return ((x + m - 1) // m) * m


# --------------------------------------------------------------------------
# Kernel 1: tiled matmul (bf16 operands, f32 accumulation)
# --------------------------------------------------------------------------
def _matmul_kernel(a_ref, b_ref, o_ref, acc_ref):
    @pl.when(pl.program_id(2) == 0)
    def _init():
        acc_ref[...] = jnp.zeros_like(acc_ref)

    acc_ref[...] += jnp.dot(a_ref[...], b_ref[...],
                            preferred_element_type=jnp.float32)

    @pl.when(pl.program_id(2) == pl.num_programs(2) - 1)
    def _finalize():
        o_ref[...] = acc_ref[...].astype(o_ref.dtype)


def pallas_matmul(a, b, *, tm=256, tn=256, tk=256, out_dtype=jnp.float32):
    """C = A @ B with tiled grid, f32 accumulator scratch, zero-padding."""
    M, K = a.shape
    K2, N = b.shape
    assert K == K2

    # clamp tiles to the (padded) problem size; keep (8,128) alignment
    tm = min(tm, _round_up(M, 8))
    tn = min(tn, _round_up(N, 128))
    tk = min(tk, _round_up(K, 128))
    Mp, Kp, Np = _round_up(M, tm), _round_up(K, tk), _round_up(N, tn)

    a_p = jnp.pad(a, ((0, Mp - M), (0, Kp - K))) if (Mp != M or Kp != K) else a
    b_p = jnp.pad(b, ((0, Kp - K), (0, Np - N))) if (Kp != K or Np != N) else b

    cost = pl.CostEstimate(
        flops=int(2 * M * N * K),
        transcendentals=0,
        bytes_accessed=int(a.dtype.itemsize * M * K
                           + b.dtype.itemsize * K * N
                           + jnp.dtype(out_dtype).itemsize * M * N))

    out = pl.pallas_call(
        _matmul_kernel,
        out_shape=jax.ShapeDtypeStruct((Mp, Np), out_dtype),
        grid=(Mp // tm, Np // tn, Kp // tk),
        in_specs=[
            pl.BlockSpec((tm, tk), lambda i, j, k: (i, k)),
            pl.BlockSpec((tk, tn), lambda i, j, k: (k, j)),
        ],
        out_specs=pl.BlockSpec((tm, tn), lambda i, j, k: (i, j)),
        scratch_shapes=[pltpu.VMEM((tm, tn), jnp.float32)],
        compiler_params=pltpu.CompilerParams(
            dimension_semantics=("parallel", "parallel", "arbitrary"),
            vmem_limit_bytes=48 * 1024 * 1024),
        cost_estimate=cost,
    )(a_p, b_p)
    return out[:M, :N]


# --------------------------------------------------------------------------
# Kernel 2: GAT masked attention + aggregation (all heads per dst tile)
# --------------------------------------------------------------------------
def _gat_attn_kernel(z_ref, ssrc_ref, sdst_ref, adj_ref, o_ref, *,
                     num_heads, out_dim, neg_slope):
    tile_n = o_ref.shape[0]
    row0 = pl.multiple_of(pl.program_id(0) * tile_n, tile_n)

    # non-edge mask for this dst-row slab, computed once, shared across heads
    no_edge = adj_ref[...] == 0                           # (tile_n, n_pad)

    for h in range(num_heads):                            # static unroll, H small
        ss = ssrc_ref[h:h + 1, :]                         # (1, n_pad)   f32
        sd = sdst_ref[pl.ds(row0, tile_n), h:h + 1]       # (tile_n, 1)  f32
        e = sd + ss                                       # (tile_n, n_pad)
        e = jnp.where(e > 0.0, e, neg_slope * e)          # leaky_relu(0.01)
        e = jnp.where(no_edge, -1e30, e)                  # mask non-edges
        m = jnp.max(e, axis=-1, keepdims=True)
        p = jnp.exp(e - m)                                # f32 numerator (un-normalized)
        denom = jnp.sum(p, axis=-1, keepdims=True)        # (tile_n, 1)

        z_h = z_ref[:, h * out_dim:(h + 1) * out_dim]     # (n_pad, D) bf16
        acc = jnp.dot(p.astype(jnp.bfloat16), z_h,        # bf16 MXU, f32 acc
                      preferred_element_type=jnp.float32)
        # deferred softmax normalization: one (tile_n, D) scale via EUP recip
        acc = acc * pl.reciprocal(denom, approx=True)
        # write this head's lane slab directly (no concat / XLU shuffles)
        o_ref[:, h * out_dim:(h + 1) * out_dim] = acc.astype(o_ref.dtype)


def gat_attention(z_flat, s_src, s_dst, adj, *, tile_n, num_heads, out_dim,
                  neg_slope):
    n_pad, hd = z_flat.shape
    kern = functools.partial(_gat_attn_kernel, num_heads=num_heads,
                             out_dim=out_dim, neg_slope=neg_slope)
    cost = pl.CostEstimate(
        flops=int(num_heads * (2 * n_pad * n_pad * out_dim
                               + 8 * n_pad * n_pad)),
        transcendentals=int(num_heads * n_pad * n_pad),
        bytes_accessed=int(2 * n_pad * hd                 # z bf16
                           + 4 * 2 * num_heads * n_pad    # scores f32
                           + n_pad * n_pad                # adj int8
                           + 4 * n_pad * hd))             # out f32
    return pl.pallas_call(
        kern,
        out_shape=jax.ShapeDtypeStruct((n_pad, hd), jnp.float32),
        grid=(n_pad // tile_n,),
        in_specs=[
            # grid-invariant blocks stay resident across dst tiles
            pl.BlockSpec((n_pad, hd), lambda i: (0, 0)),          # z (bf16)
            pl.BlockSpec((num_heads, n_pad), lambda i: (0, 0)),   # src scores
            pl.BlockSpec((n_pad, num_heads), lambda i: (0, 0)),   # dst scores
            # adjacency row slab is the only per-step streamed input (int8)
            pl.BlockSpec((tile_n, n_pad), lambda i: (i, 0)),
        ],
        out_specs=pl.BlockSpec((tile_n, hd), lambda i: (i, 0)),   # lane-dense
        compiler_params=pltpu.CompilerParams(
            dimension_semantics=("parallel",),
            vmem_limit_bytes=48 * 1024 * 1024),
        cost_estimate=cost,
    )(z_flat, s_src, s_dst, adj)


# --------------------------------------------------------------------------
# Weight folding:  [W_0^T | ... | W_{H-1}^T | W^T a_src | W^T a_dst]
# --------------------------------------------------------------------------
def _augmented_weights(W, attn_w):
    num_heads, out_dim, in_dim = W.shape
    w_cat = jnp.transpose(W, (2, 0, 1)).reshape(in_dim, num_heads * out_dim)
    a_src = attn_w[:, :out_dim]                    # applied to src z
    a_dst = attn_w[:, out_dim:]                    # applied to dst z
    fold_src = jnp.einsum("hdi,hd->ih", W, a_src)  # (in_dim, H) = W_h^T a_src_h
    fold_dst = jnp.einsum("hdi,hd->ih", W, a_dst)  # (in_dim, H) = W_h^T a_dst_h
    return jnp.concatenate([w_cat, fold_src, fold_dst], axis=1)


# --------------------------------------------------------------------------
# MultiHeadGATLayer forward
# --------------------------------------------------------------------------
def multi_head_gat_forward(h_feat, adj, W, attn_w, *, merge="cat",
                           neg_slope=0.01):
    """
    h_feat : (N, in_dim)            node features
    adj    : (N, N)  adj[i, j] = 1 iff edge  src j -> dst i
    W      : (H, out_dim, in_dim)   per-head fc weights (no bias)
    attn_w : (H, 2*out_dim)         per-head attn_fc weights (no bias)
    """
    num_heads, out_dim, in_dim = W.shape
    n = h_feat.shape[0]
    hd = num_heads * out_dim

    # one fused matmul -> z for all heads + per-node attention scores
    w_aug = _augmented_weights(W, attn_w).astype(jnp.bfloat16)  # (in, H*D+2H)
    proj = pallas_matmul(h_feat.astype(jnp.bfloat16), w_aug)    # (n, H*D+2H) f32

    z_flat = proj[:, :hd].astype(jnp.bfloat16)                  # (n, H*D) bf16
    s_src = proj[:, hd:hd + num_heads].T                        # (H, n)  f32
    s_dst = proj[:, hd + num_heads:hd + 2 * num_heads]          # (n, H)  f32

    # pad node axis to a multiple of the dst tile (padded rows cropped later;
    # padded src columns have adj == 0 and never contribute)
    tile_n = min(256, _round_up(n, 8))
    n_pad = _round_up(n, tile_n)
    pad = n_pad - n
    if pad:
        z_flat = jnp.pad(z_flat, ((0, pad), (0, 0)))
        s_src = jnp.pad(s_src, ((0, 0), (0, pad)))
        s_dst = jnp.pad(s_dst, ((0, pad), (0, 0)))
        adj = jnp.pad(adj, ((0, pad), (0, pad)))
    adj_i8 = (adj > 0).astype(jnp.int8)

    out = gat_attention(z_flat, s_src, s_dst, adj_i8,
                        tile_n=tile_n, num_heads=num_heads, out_dim=out_dim,
                        neg_slope=neg_slope)                    # (n_pad, H*D)
    out = out[:n]
    if merge == "cat":
        return out                                              # (N, H*out_dim)
    # literal port of torch.mean(torch.stack(head_outs)) -> scalar mean
    return jnp.mean(out)


# --------------------------------------------------------------------------
# Pure-JAX reference (same bf16 operand quantization as the MXU path)
# --------------------------------------------------------------------------
def reference_gat(h_feat, adj, W, attn_w, neg_slope=0.01):
    num_heads, out_dim, in_dim = W.shape
    hd = num_heads * out_dim
    w_aug = _augmented_weights(W, attn_w).astype(jnp.bfloat16)
    proj = jnp.dot(h_feat.astype(jnp.bfloat16), w_aug,
                   preferred_element_type=jnp.float32)
    z = proj[:, :hd].astype(jnp.bfloat16).astype(jnp.float32)   # bf16-stored z
    outs = []
    for hh in range(num_heads):
        z_h = z[:, hh * out_dim:(hh + 1) * out_dim]
        s_src = proj[:, hd + hh]
        s_dst = proj[:, hd + num_heads + hh]
        e = s_dst[:, None] + s_src[None, :]
        e = jnp.where(e > 0.0, e, neg_slope * e)
        e = jnp.where(adj > 0, e, -1e30)
        alpha = jax.nn.softmax(e, axis=1)
        outs.append(alpha @ z_h)
    return jnp.concatenate(outs, axis=1)


# --------------------------------------------------------------------------
if __name__ == "__main__":
    N, in_dim, out_dim, num_heads = 64, 32, 32, 4

    key = jax.random.PRNGKey(0)
    k_h, k_w, k_a, k_adj = jax.random.split(key, 4)

    # node features
    h_feat = jax.random.normal(k_h, (N, in_dim), jnp.float32)

    # random directed graph with self-loops; adj[i, j] = 1 iff edge j -> i
    adj = (jax.random.uniform(k_adj, (N, N)) < 0.2).astype(jnp.float32)
    adj = jnp.maximum(adj, jnp.eye(N, dtype=jnp.float32))

    # xavier_normal_(gain=calculate_gain('relu')) initialization
    gain = math.sqrt(2.0)
    std_fc = gain * math.sqrt(2.0 / (in_dim + out_dim))
    std_attn = gain * math.sqrt(2.0 / (2 * out_dim + 1))
    W = jax.random.normal(k_w, (num_heads, out_dim, in_dim),
                          jnp.float32) * std_fc
    attn_w = jax.random.normal(k_a, (num_heads, 2 * out_dim),
                               jnp.float32) * std_attn

    out = multi_head_gat_forward(h_feat, adj, W, attn_w, merge="cat")
    out = jax.block_until_ready(out)
    assert out.shape == (N, num_heads * out_dim)

    ref = reference_gat(h_feat, adj, W, attn_w)
    err = float(jnp.max(jnp.abs(out - ref)))
    scale = float(jnp.max(jnp.abs(ref))) + 1e-6
    assert err / scale < 2e-2, f"mismatch: rel_err={err / scale:.4e}"

    print("KERNEL_OK")
</pallas_src>

<mosaic_0001>
module attributes {stable_mosaic.version = 11 : i64} {
  func.func @_matmul_kernel(%arg0: i32, %arg1: i32, %arg2: i32, %arg3: memref<64x128xbf16, #tpu.memory_space<vmem>>, %arg4: memref<128x256xbf16, #tpu.memory_space<vmem>>, %arg5: memref<64x256xf32, #tpu.memory_space<vmem>>, %arg6: memref<64x256xf32, #tpu.memory_space<vmem>>) attributes {dimension_semantics = [#tpu.dimension_semantics<parallel>, #tpu.dimension_semantics<parallel>, #tpu.dimension_semantics<arbitrary>], iteration_bounds = array<i64: 1, 1, 1>, scalar_prefetch = 0 : i64, scratch_operands = 1 : i64, tpu.core_type = #tpu.core_type<tc>, window_params = [{transform_indices = @transform_0, window_bounds = array<i64: 64, 128>}, {transform_indices = @transform_1, window_bounds = array<i64: 128, 256>}, {transform_indices = @transform_2, window_bounds = array<i64: 64, 256>}]} {
    %c0_i32 = arith.constant 0 : i32
    %0 = arith.cmpi eq, %arg2, %c0_i32 : i32
    %1 = arith.extui %0 : i1 to i32
    %c0_i32_0 = arith.constant 0 : i32
    %2 = arith.cmpi ne, %1, %c0_i32_0 : i32
    scf.if %2 {
      %cst_10 = arith.constant 0.000000e+00 : f32
      %12 = vector.broadcast %cst_10 : f32 to vector<64x256xf32>
      %c0_11 = arith.constant 0 : index
      %c0_12 = arith.constant 0 : index
      %13 = vector.load %arg6[%c0_11, %c0_12] : memref<64x256xf32, #tpu.memory_space<vmem>>, vector<64x256xf32>
      tpu.vector_store %arg6[%c0_11, %c0_12], %12 {strides = array<i32>} : memref<64x256xf32, #tpu.memory_space<vmem>>, vector<64x256xf32>,
    } else {
    }
    %c0 = arith.constant 0 : index
    %c0_1 = arith.constant 0 : index
    %3 = vector.load %arg6[%c0, %c0_1] : memref<64x256xf32, #tpu.memory_space<vmem>>, vector<64x256xf32>
    %c0_2 = arith.constant 0 : index
    %c0_3 = arith.constant 0 : index
    %4 = vector.load %arg3[%c0_2, %c0_3] : memref<64x128xbf16, #tpu.memory_space<vmem>>, vector<64x128xbf16>
    %c0_4 = arith.constant 0 : index
    %c0_5 = arith.constant 0 : index
    %5 = vector.load %arg4[%c0_4, %c0_5] : memref<128x256xbf16, #tpu.memory_space<vmem>>, vector<128x256xbf16>
    %cst = arith.constant dense<0.000000e+00> : vector<64x256xf32>
    %6 = tpu.matmul %4, %5, %cst {dimension_numbers = #tpu.dot_dimension_numbers<[1], [0], [0], [1], [0, 0, 1, 1], [], []>} : vector<64x128xbf16>, vector<128x256xbf16>, vector<64x256xf32> -> vector<64x256xf32>
    %7 = arith.addf %3, %6 : vector<64x256xf32>
    %c0_6 = arith.constant 0 : index
    %c0_7 = arith.constant 0 : index
    %8 = vector.load %arg6[%c0_6, %c0_7] : memref<64x256xf32, #tpu.memory_space<vmem>>, vector<64x256xf32>
    tpu.vector_store %arg6[%c0_6, %c0_7], %7 {strides = array<i32>} : memref<64x256xf32, #tpu.memory_space<vmem>>, vector<64x256xf32>,
    %c0_i32_8 = arith.constant 0 : i32
    %9 = arith.cmpi eq, %arg2, %c0_i32_8 : i32
    %10 = arith.extui %9 : i1 to i32
    %c0_i32_9 = arith.constant 0 : i32
    %11 = arith.cmpi ne, %10, %c0_i32_9 : i32
    scf.if %11 {
      %c0_10 = arith.constant 0 : index
      %c0_11 = arith.constant 0 : index
      %12 = vector.load %arg6[%c0_10, %c0_11] : memref<64x256xf32, #tpu.memory_space<vmem>>, vector<64x256xf32>
      %c0_12 = arith.constant 0 : index
      %c0_13 = arith.constant 0 : index
      %13 = vector.load %arg5[%c0_12, %c0_13] : memref<64x256xf32, #tpu.memory_space<vmem>>, vector<64x256xf32>
      tpu.vector_store %arg5[%c0_12, %c0_13], %12 {strides = array<i32>} : memref<64x256xf32, #tpu.memory_space<vmem>>, vector<64x256xf32>,
    } else {
    }
    return
  }
  func.func @transform_0(%arg0: i32, %arg1: i32, %arg2: i32) -> (i32, i32) {
    %c0_i32 = arith.constant 0 : i32
    return %arg0, %arg2 : i32, i32
  }
  func.func @transform_1(%arg0: i32, %arg1: i32, %arg2: i32) -> (i32, i32) {
    %c0_i32 = arith.constant 0 : i32
    return %arg2, %arg1 : i32, i32
  }
  func.func @transform_2(%arg0: i32, %arg1: i32, %arg2: i32) -> (i32, i32) {
    %c0_i32 = arith.constant 0 : i32
    return %arg0, %arg1 : i32, i32
  }
}

</mosaic_0001>

<llo_original>
// kernel: tpu_custom_call.1
$region0: #{tpu_custom_call.1}
  #allocation0 [shape = 'u32[]', space=smem, size = 0x4, offset = 0x4, fixed_abs, tag = 'smem constant byte address 0x4 - core index']
  #allocation1 [shape = 'u32[144,128]{1,0:T(1,128)}', space=vmem, size = 0x12000, scoped, tag = 'internal scratch']
  #allocation2 [shape = 'f32[64,256]{1,0:T(8,128)}', space=vmem, size = 0x10000, scoped, tag = 'scratch operand']
  %s0 = inlined_call_operand.hbm [shape: bf16[64,128], index: 0, kind: input, shape index: {}]
  %s1 = inlined_call_operand.hbm [shape: bf16[128,256], index: 1, kind: input, shape index: {}]
  %s2 = inlined_call_operand.hbm [shape: f32[64,256], index: 2, kind: output, shape index: {}]
  %s3 = sld [smem:[#allocation0]]
  $region34: #{tpu_custom_call.1} parent=0
    _
  %s5 = ssub.s32 1, %s3
  %s6 = scalar_select 0, %s5, %s3
  $region1: #{tpu_custom_call.1} parent=0
    #allocation3 [shape = 'u8[16384]{0}', space=vmem, size = 0x4000, scoped, tag = 'input window, operand 0, single buffered']
    #allocation4 [shape = 's32[1]{0}', space=sflag, size = 0x4, scoped, tag = 'scoped memory for tpu_custom_call.1']
    #allocation5 [shape = 's32[1]{0}', space=sflag, size = 0x4, scoped, tag = 'scoped memory for tpu_custom_call.1']
    #allocation6 [shape = 'u8[65536]{0}', space=vmem, size = 0x10000, scoped, tag = 'input window, operand 1, single buffered']
    #allocation7 [shape = 's32[1]{0}', space=sflag, size = 0x4, scoped, tag = 'scoped memory for tpu_custom_call.1']
    #allocation8 [shape = 'u8[65536]{0}', space=vmem, size = 0x10000, scoped, tag = 'output window, operand 0, single buffered']
    %7 = vsyncpa [#allocation4], 0
    %8 = vsyncpa [#allocation7], 0
    %9 = vsyncpa [#allocation5], 0
    // Predicated region
    $region2: #{tpu_custom_call.1} parent=1 // pred_check
      _
    $region3: #{tpu_custom_call.1} parent=1 // pred_check_branch
      %11 = sbr.rel (0) target = $region5
    $region4: #{tpu_custom_call.1} parent=1 // pred_region
      %s13 = ssub.s32 512, 512
      %14 = vsyncadd [#allocation4], %s13
      %s15 = sshll.u32 [#allocation3], 4
      %s16 = int_to_ptr.vmem [resolvable:$true] %s15
      %21 = dma.hbm_to_vmem [thread:$0]  %s0, 512, %s16, [#allocation4], 64, 64, 4
    $region5: #{tpu_custom_call.1} parent=1 // pred_fallthru
      _
    // Predicated region
    $region6: #{tpu_custom_call.1} parent=1 // pred_check
      _
    $region7: #{tpu_custom_call.1} parent=1 // pred_check_branch
      %23 = sbr.rel (0) target = $region9
    $region8: #{tpu_custom_call.1} parent=1 // pred_region
      %s25 = ssub.s32 2048, 2048
      %26 = vsyncadd [#allocation7], %s25
      %s27 = sshll.u32 [#allocation6], 4
      %s28 = int_to_ptr.vmem [resolvable:$true] %s27
      %33 = dma.hbm_to_vmem [thread:$0]  %s1, 2048, %s28, [#allocation7], 128, 128, 8
    $region9: #{tpu_custom_call.1} parent=1 // pred_fallthru
      _
    // Predicated region
    $region10: #{tpu_custom_call.1} parent=1 // pred_check
      _
    $region11: #{tpu_custom_call.1} parent=1 // pred_check_branch
      %35 = sbr.rel (0) target = $region13
    $region12: #{tpu_custom_call.1} parent=1 // pred_region
      %36 = dma.done [#allocation4], 512
    $region13: #{tpu_custom_call.1} parent=1 // pred_fallthru
      _
    // Predicated region
    $region14: #{tpu_custom_call.1} parent=1 // pred_check
      _
    $region15: #{tpu_custom_call.1} parent=1 // pred_check_branch
      %38 = sbr.rel (0) target = $region17
    $region16: #{tpu_custom_call.1} parent=1 // pred_region
      %39 = dma.done [#allocation7], 2048
    $region17: #{tpu_custom_call.1} parent=1 // pred_fallthru
      _
    %p41 = scmp.eq.s32.totalorder 0, 0
    // Predicated region
    $region18: #{tpu_custom_call.1} parent=1 // pred_check
      %p42 = pneg %p41
    $region19: #{tpu_custom_call.1} parent=1 // pred_check_branch
      %44 = sbr.rel (%p42) target = $region21
    $region20: #{tpu_custom_call.1} parent=1 // pred_region
      %45 = vst [vmem:[#allocation2] sm:$0xff] 0.0
      %46 = vst [vmem:[#allocation2 + $0x8] sm:$0xff] 0.0
      %47 = vst [vmem:[#allocation2 + $0x10] sm:$0xff] 0.0
      %48 = vst [vmem:[#allocation2 + $0x18] sm:$0xff] 0.0
      %49 = vst [vmem:[#allocation2 + $0x20] sm:$0xff] 0.0
      %50 = vst [vmem:[#allocation2 + $0x28] sm:$0xff] 0.0
      %51 = vst [vmem:[#allocation2 + $0x30] sm:$0xff] 0.0
      %52 = vst [vmem:[#allocation2 + $0x38] sm:$0xff] 0.0
      %53 = vst [vmem:[#allocation2 + $0x40] sm:$0xff] 0.0
      %54 = vst [vmem:[#allocation2 + $0x48] sm:$0xff] 0.0
      %55 = vst [vmem:[#allocation2 + $0x50] sm:$0xff] 0.0
      %56 = vst [vmem:[#allocation2 + $0x58] sm:$0xff] 0.0
      %57 = vst [vmem:[#allocation2 + $0x60] sm:$0xff] 0.0
      %58 = vst [vmem:[#allocation2 + $0x68] sm:$0xff] 0.0
      %59 = vst [vmem:[#allocation2 + $0x70] sm:$0xff] 0.0
      %60 = vst [vmem:[#allocation2 + $0x78] sm:$0xff] 0.0
    $region21: #{tpu_custom_call.1} parent=1 // pred_fallthru
      _
    %v61 = vld [vmem:[#allocation2] sm:$0xff]
    %v62 = vld [vmem:[#allocation2 + $0x8] sm:$0xff]
    %v63 = vld [vmem:[#allocation2 + $0x10] sm:$0xff]
    %v64 = vld [vmem:[#allocation2 + $0x18] sm:$0xff]
    %v65 = vld [vmem:[#allocation2 + $0x20] sm:$0xff]
    %v66 = vld [vmem:[#allocation2 + $0x28] sm:$0xff]
    %v67 = vld [vmem:[#allocation2 + $0x30] sm:$0xff]
    %v68 = vld [vmem:[#allocation2 + $0x38] sm:$0xff]
    %v69 = vld [vmem:[#allocation2 + $0x40] sm:$0xff]
    %v70 = vld [vmem:[#allocation2 + $0x48] sm:$0xff]
    %v71 = vld [vmem:[#allocation2 + $0x50] sm:$0xff]
    %v72 = vld [vmem:[#allocation2 + $0x58] sm:$0xff]
    %v73 = vld [vmem:[#allocation2 + $0x60] sm:$0xff]
    %v74 = vld [vmem:[#allocation2 + $0x68] sm:$0xff]
    %v75 = vld [vmem:[#allocation2 + $0x70] sm:$0xff]
    %v76 = vld [vmem:[#allocation2 + $0x78] sm:$0xff]
    %v77 = vld [vmem:[#allocation3] sm:$0xf]
    %v78 = vld [vmem:[#allocation3 + $0x4] sm:$0xf]
    %v79 = vld [vmem:[#allocation3 + $0x8] sm:$0xf]
    %v80 = vld [vmem:[#allocation3 + $0xc] sm:$0xf]
    %v81 = vld [vmem:[#allocation3 + $0x10] sm:$0xf]
    %v82 = vld [vmem:[#allocation3 + $0x14] sm:$0xf]
    %v83 = vld [vmem:[#allocation3 + $0x18] sm:$0xf]
    %v84 = vld [vmem:[#allocation3 + $0x1c] sm:$0xf]
    %v85 = vld [vmem:[#allocation6] sm:$0xff]
    %v86 = vld [vmem:[#allocation6 + $0x8] sm:$0xff]
    %v87 = vld [vmem:[#allocation6 + $0x10] sm:$0xff]
    %v88 = vld [vmem:[#allocation6 + $0x18] sm:$0xff]
    %v89 = vld [vmem:[#allocation6 + $0x20] sm:$0xff]
    %v90 = vld [vmem:[#allocation6 + $0x28] sm:$0xff]
    %v91 = vld [vmem:[#allocation6 + $0x30] sm:$0xff]
    %v92 = vld [vmem:[#allocation6 + $0x38] sm:$0xff]
    %v93 = vld [vmem:[#allocation6 + $0x40] sm:$0xff]
    %v94 = vld [vmem:[#allocation6 + $0x48] sm:$0xff]
    %v95 = vld [vmem:[#allocation6 + $0x50] sm:$0xff]
    %v96 = vld [vmem:[#allocation6 + $0x58] sm:$0xff]
    %v97 = vld [vmem:[#allocation6 + $0x60] sm:$0xff]
    %v98 = vld [vmem:[#allocation6 + $0x68] sm:$0xff]
    %v99 = vld [vmem:[#allocation6 + $0x70] sm:$0xff]
    %v100 = vld [vmem:[#allocation6 + $0x78] sm:$0xff]
    %v109 = vunpack.c.l.b16 %v77
    %v110 = vunpack.c.l.b16 %v78
    %v111 = vunpack.c.l.b16 %v79
    %v112 = vunpack.c.l.b16 %v80
    %v113 = vunpack.c.l.b16 %v81
    %v114 = vunpack.c.l.b16 %v82
    %v115 = vunpack.c.l.b16 %v83
    %v116 = vunpack.c.l.b16 %v84
    %v117 = vpack.c.b16 %v110, %v109
    %v118 = vpack.c.b16 %v112, %v111
    %v119 = vpack.c.b16 %v114, %v113
    %v120 = vpack.c.b16 %v116, %v115
    %v141 = vunpack.c.l.b16 %v85
    %v142 = vunpack.c.h.b16 %v85
    %v143 = vunpack.c.l.b16 %v86
    %v144 = vunpack.c.h.b16 %v86
    %v145 = vunpack.c.l.b16 %v87
    %v146 = vunpack.c.h.b16 %v87
    %v147 = vunpack.c.l.b16 %v88
    %v148 = vunpack.c.h.b16 %v88
    %v149 = vunpack.c.l.b16 %v89
    %v150 = vunpack.c.h.b16 %v89
    %v151 = vunpack.c.l.b16 %v90
    %v152 = vunpack.c.h.b16 %v90
    %v153 = vunpack.c.l.b16 %v91
    %v154 = vunpack.c.h.b16 %v91
    %v155 = vunpack.c.l.b16 %v92
    %v156 = vunpack.c.h.b16 %v92
    %v157 = vunpack.c.l.b16 %v93
    %v158 = vunpack.c.h.b16 %v93
    %v159 = vunpack.c.l.b16 %v94
    %v160 = vunpack.c.h.b16 %v94
    %v161 = vunpack.c.l.b16 %v95
    %v162 = vunpack.c.h.b16 %v95
    %v163 = vunpack.c.l.b16 %v96
    %v164 = vunpack.c.h.b16 %v96
    %v165 = vunpack.c.l.b16 %v97
    %v166 = vunpack.c.h.b16 %v97
    %v167 = vunpack.c.l.b16 %v98
    %v168 = vunpack.c.h.b16 %v98
    %v169 = vunpack.c.l.b16 %v99
    %v170 = vunpack.c.h.b16 %v99
    %v171 = vunpack.c.l.b16 %v100
    %v172 = vunpack.c.h.b16 %v100
    %v173 = vpack.c.b16 %v143, %v141
    %v174 = vpack.c.b16 %v144, %v142
    %v175 = vpack.c.b16 %v147, %v145
    %v176 = vpack.c.b16 %v148, %v146
    %v177 = vpack.c.b16 %v151, %v149
    %v178 = vpack.c.b16 %v152, %v150
    %v179 = vpack.c.b16 %v155, %v153
    %v180 = vpack.c.b16 %v156, %v154
    %v181 = vpack.c.b16 %v159, %v157
    %v182 = vpack.c.b16 %v160, %v158
    %v183 = vpack.c.b16 %v163, %v161
    %v184 = vpack.c.b16 %v164, %v162
    %v185 = vpack.c.b16 %v167, %v165
    %v186 = vpack.c.b16 %v168, %v166
    %v187 = vpack.c.b16 %v171, %v169
    %v188 = vpack.c.b16 %v172, %v170
    %205 = vmatprep.subr.bf16.mxu0 %v188
    %206 = vmatpush1.bf16.msra.mxu0 %v187
    %207 = vmatprep.subr.bf16.mxu0 %v186
    %208 = vmatpush1.bf16.msra.mxu0 %v185
    %209 = vmatprep.subr.bf16.mxu0 %v184
    %210 = vmatpush1.bf16.msra.mxu0 %v183
    %211 = vmatprep.subr.bf16.mxu0 %v182
    %212 = vmatpush1.bf16.msra.mxu0 %v181
    %213 = vmatprep.subr.bf16.mxu0 %v180
    %214 = vmatpush1.bf16.msra.mxu0 %v179
    %215 = vmatprep.subr.bf16.mxu0 %v178
    %216 = vmatpush1.bf16.msra.mxu0 %v177
    %217 = vmatprep.subr.bf16.mxu0 %v176
    %218 = vmatpush1.bf16.msra.mxu0 %v175
    %219 = vmatprep.subr.bf16.mxu0 %v174
    %220 = vmatpush1.bf16.msra.mxu0 %v173
    %221 = vmatprep.subr.bf16.mxu0 0
    %222 = vmatpush2.bf16.msra.mxu0 0
    %223 = vmatprep.subr.bf16.mxu0 0
    %224 = vmatpush2.bf16.msra.mxu0 0
    %225 = vmatprep.subr.bf16.mxu0 0
    %226 = vmatpush2.bf16.msra.mxu0 0
    %227 = vmatprep.subr.bf16.mxu0 0
    %228 = vmatpush2.bf16.msra.mxu0 0
    %229 = vmatprep.subr.bf16.mxu0 0
    %230 = vmatpush2.bf16.msra.mxu0 0
    %231 = vmatprep.subr.bf16.mxu0 0
    %232 = vmatpush2.bf16.msra.mxu0 0
    %233 = vmatprep.subr.bf16.mxu0 0
    %234 = vmatpush2.bf16.msra.mxu0 0
    %235 = vmatprep.subr.bf16.mxu0 0
    %236 = vmatpush2.bf16.msra.mxu0 0
    %237 = vmatprep.mubr.bf16.mxu0 0
    %238 = vmatmul.mubr.bf16.gmra.mxu0 %v117
    %v239 = vpop.f32.mrf.mxu0
    %v240 = vadd.f32 0.0, %v239
    %v241 = vpop.f32.mrf.mxu0
    %v242 = vadd.f32 0.0, %v241
    %v243 = vpop.f32.mrf.mxu0
    %v244 = vadd.f32 0.0, %v243
    %v245 = vpop.f32.mrf.mxu0
    %v246 = vadd.f32 0.0, %v245
    %247 = vmatprep.mubr.bf16.mxu0 0
    %248 = vmatmul.mubr.bf16.gmra.mxu0 %v118
    %v249 = vpop.f32.mrf.mxu0
    %v250 = vadd.f32 0.0, %v249
    %v251 = vpop.f32.mrf.mxu0
    %v252 = vadd.f32 0.0, %v251
    %v253 = vpop.f32.mrf.mxu0
    %v254 = vadd.f32 0.0, %v253
    %v255 = vpop.f32.mrf.mxu0
    %v256 = vadd.f32 0.0, %v255
    %257 = vmatprep.mubr.bf16.mxu0 0
    %258 = vmatmul.mubr.bf16.gmra.mxu0 %v119
    %v259 = vpop.f32.mrf.mxu0
    %v260 = vadd.f32 0.0, %v259
    %v261 = vpop.f32.mrf.mxu0
    %v262 = vadd.f32 0.0, %v261
    %v263 = vpop.f32.mrf.mxu0
    %v264 = vadd.f32 0.0, %v263
    %v265 = vpop.f32.mrf.mxu0
    %v266 = vadd.f32 0.0, %v265
    %267 = vmatprep.mubr.bf16.mxu0 0
    %268 = vmatmul.mubr.bf16.gmra.mxu0 %v120
    %v269 = vpop.f32.mrf.mxu0
    %v270 = vadd.f32 0.0, %v269
    %v271 = vpop.f32.mrf.mxu0
    %v272 = vadd.f32 0.0, %v271
    %v273 = vpop.f32.mrf.mxu0
    %v274 = vadd.f32 0.0, %v273
    %v275 = vpop.f32.mrf.mxu0
    %v276 = vadd.f32 0.0, %v275
    %277 = vdwg.mxu0
    %v278 = vadd.f32 %v61, %v240
    %v279 = vadd.f32 %v62, %v242
    %v280 = vadd.f32 %v63, %v244
    %v281 = vadd.f32 %v64, %v246
    %v282 = vadd.f32 %v65, %v250
    %v283 = vadd.f32 %v66, %v252
    %v284 = vadd.f32 %v67, %v254
    %v285 = vadd.f32 %v68, %v256
    %v286 = vadd.f32 %v69, %v260
    %v287 = vadd.f32 %v70, %v262
    %v288 = vadd.f32 %v71, %v264
    %v289 = vadd.f32 %v72, %v266
    %v290 = vadd.f32 %v73, %v270
    %v291 = vadd.f32 %v74, %v272
    %v292 = vadd.f32 %v75, %v274
    %v293 = vadd.f32 %v76, %v276
    %294 = vst [vmem:[#allocation2] sm:$0xff] %v278
    %295 = vst [vmem:[#allocation2 + $0x8] sm:$0xff] %v279
    %296 = vst [vmem:[#allocation2 + $0x10] sm:$0xff] %v280
    %297 = vst [vmem:[#allocation2 + $0x18] sm:$0xff] %v281
    %298 = vst [vmem:[#allocation2 + $0x20] sm:$0xff] %v282
    %299 = vst [vmem:[#allocation2 + $0x28] sm:$0xff] %v283
    %300 = vst [vmem:[#allocation2 + $0x30] sm:$0xff] %v284
    %301 = vst [vmem:[#allocation2 + $0x38] sm:$0xff] %v285
    %302 = vst [vmem:[#allocation2 + $0x40] sm:$0xff] %v286
    %303 = vst [vmem:[#allocation2 + $0x48] sm:$0xff] %v287
    %304 = vst [vmem:[#allocation2 + $0x50] sm:$0xff] %v288
    %305 = vst [vmem:[#allocation2 + $0x58] sm:$0xff] %v289
    %306 = vst [vmem:[#allocation2 + $0x60] sm:$0xff] %v290
    %307 = vst [vmem:[#allocation2 + $0x68] sm:$0xff] %v291
    %308 = vst [vmem:[#allocation2 + $0x70] sm:$0xff] %v292
    %309 = vst [vmem:[#allocation2 + $0x78] sm:$0xff] %v293
    // Predicated region
    $region22: #{tpu_custom_call.1} parent=1 // pred_check
      %p310 = pneg %p41
    $region23: #{tpu_custom_call.1} parent=1 // pred_check_branch
      %312 = sbr.rel (%p310) target = $region25
    $region24: #{tpu_custom_call.1} parent=1 // pred_region
      %v313 = vld [vmem:[#allocation2] sm:$0xff]
      %v314 = vld [vmem:[#allocation2 + $0x8] sm:$0xff]
      %v315 = vld [vmem:[#allocation2 + $0x10] sm:$0xff]
      %v316 = vld [vmem:[#allocation2 + $0x18] sm:$0xff]
      %v317 = vld [vmem:[#allocation2 + $0x20] sm:$0xff]
      %v318 = vld [vmem:[#allocation2 + $0x28] sm:$0xff]
      %v319 = vld [vmem:[#allocation2 + $0x30] sm:$0xff]
      %v320 = vld [vmem:[#allocation2 + $0x38] sm:$0xff]
      %v321 = vld [vmem:[#allocation2 + $0x40] sm:$0xff]
      %v322 = vld [vmem:[#allocation2 + $0x48] sm:$0xff]
      %v323 = vld [vmem:[#allocation2 + $0x50] sm:$0xff]
      %v324 = vld [vmem:[#allocation2 + $0x58] sm:$0xff]
      %v325 = vld [vmem:[#allocation2 + $0x60] sm:$0xff]
      %v326 = vld [vmem:[#allocation2 + $0x68] sm:$0xff]
      %v327 = vld [vmem:[#allocation2 + $0x70] sm:$0xff]
      %v328 = vld [vmem:[#allocation2 + $0x78] sm:$0xff]
      %329 = vst [vmem:[#allocation8] sm:$0xff] %v313
      %330 = vst [vmem:[#allocation8 + $0x8] sm:$0xff] %v314
      %331 = vst [vmem:[#allocation8 + $0x10] sm:$0xff] %v315
      %332 = vst [vmem:[#allocation8 + $0x18] sm:$0xff] %v316
      %333 = vst [vmem:[#allocation8 + $0x20] sm:$0xff] %v317
      %334 = vst [vmem:[#allocation8 + $0x28] sm:$0xff] %v318
      %335 = vst [vmem:[#allocation8 + $0x30] sm:$0xff] %v319
      %336 = vst [vmem:[#allocation8 + $0x38] sm:$0xff] %v320
      %337 = vst [vmem:[#allocation8 + $0x40] sm:$0xff] %v321
      %338 = vst [vmem:[#allocation8 + $0x48] sm:$0xff] %v322
      %339 = vst [vmem:[#allocation8 + $0x50] sm:$0xff] %v323
      %340 = vst [vmem:[#allocation8 + $0x58] sm:$0xff] %v324
      %341 = vst [vmem:[#allocation8 + $0x60] sm:$0xff] %v325
      %342 = vst [vmem:[#allocation8 + $0x68] sm:$0xff] %v326
      %343 = vst [vmem:[#allocation8 + $0x70] sm:$0xff] %v327
      %344 = vst [vmem:[#allocation8 + $0x78] sm:$0xff] %v328
    $region25: #{tpu_custom_call.1} parent=1 // pred_fallthru
      _
    // Predicated region
    $region26: #{tpu_custom_call.1} parent=1 // pred_check
      _
    $region27: #{tpu_custom_call.1} parent=1 // pred_check_branch
      %346 = sbr.rel (0) target = $region29
    $region28: #{tpu_custom_call.1} parent=1 // pred_region
      %s348 = ssub.s32 2048, 2048
      %349 = vsyncadd [#allocation5], %s348
      %s350 = sshll.u32 [#allocation8], 4
      %s351 = int_to_ptr.vmem [resolvable:$true] %s350
      %356 = dma.vmem_to_hbm [thread:$0]  %s351, 2048, %s2, [#allocation5], 256, 256, 16
    $region29: #{tpu_custom_call.1} parent=1 // pred_fallthru
      _
    // Predicated region
    $region30: #{tpu_custom_call.1} parent=1 // pred_check
      _
    $region31: #{tpu_custom_call.1} parent=1 // pred_check_branch
      %358 = sbr.rel (0) target = $region33
    $region32: #{tpu_custom_call.1} parent=1 // pred_region
      %359 = dma.done [#allocation5], 2048
    $region33: #{tpu_custom_call.1} parent=1 // pred_fallthru
      _
    %360 = vsyncpa [#allocation4], 1
    %361 = vsyncpa [#allocation7], 1
    %362 = vsyncpa [#allocation5], 1

</llo_original>
